<compile_context>
chip_gen: v5e
topology: v5e:2x2
jax: 0.10.0
libtpu: 0.0.40
codegen_flags: <defaults>
</compile_context>

<pallas_src>
import functools

import jax
import jax.numpy as jnp
from jax.experimental import pallas as pl
from jax.experimental.pallas import tpu as pltpu


# ----------------------------------------------------------------------------
# helpers
# ----------------------------------------------------------------------------
_TM_MAX = 256     # row-tile cap (rows per grid step); small vs VMEM even on v7x
_FB_MAX = 16      # frequency bins per grid step in the Fourier kernel


def _row_tiles(m, tm_max=_TM_MAX):
    """Pick (tm, m_padded, n_blocks).  tm is always a multiple of 8 (sublane
    tiling) unless it equals the full padded extent; small problems run as a
    single full-slab block."""
    m8 = ((m + 7) // 8) * 8
    if m8 <= tm_max:
        return m8, m8, 1
    tm = tm_max
    m_pad = ((m + tm - 1) // tm) * tm
    return tm, m_pad, m_pad // tm


def _pad_rows(x2d, m_pad):
    m = x2d.shape[0]
    if m_pad != m:
        x2d = jnp.pad(x2d, ((0, m_pad - m), (0, 0)))
    return x2d


def _softplus(x):
    # PyTorch nn.Softplus (beta=1, threshold=20); computed in f32 (v5e VPU/EUP
    # have no bf16 element-wise support).
    return jnp.where(x > 20.0, x, jnp.log1p(jnp.exp(jnp.minimum(x, 20.0))))


# ----------------------------------------------------------------------------
# Kernel 1: plain linear  y = x @ W + b   (used for self.pred)
# ----------------------------------------------------------------------------
def _linear_kernel(x_ref, w_ref, b_ref, o_ref):
    o_ref[...] = (
        jnp.dot(x_ref[...], w_ref[...], preferred_element_type=jnp.float32)
        + b_ref[...]
    )


def linear_pallas(x2d, w, b):
    m = x2d.shape[0]
    tm, m_pad, nb = _row_tiles(m)
    x_p = _pad_rows(x2d.astype(jnp.bfloat16), m_pad)
    K = x_p.shape[1]
    N = w.shape[1]
    out = pl.pallas_call(
        _linear_kernel,
        out_shape=jax.ShapeDtypeStruct((m_pad, N), jnp.float32),
        grid=(nb,),
        in_specs=[
            pl.BlockSpec((tm, K), lambda i: (i, 0)),
            pl.BlockSpec((K, N), lambda i: (0, 0)),
            pl.BlockSpec((1, N), lambda i: (0, 0)),
        ],
        out_specs=pl.BlockSpec((tm, N), lambda i: (i, 0)),
        compiler_params=pltpu.CompilerParams(dimension_semantics=("parallel",)),
    )(x_p, w.astype(jnp.bfloat16), b.reshape(1, N).astype(jnp.float32))
    return out[:m]


# ----------------------------------------------------------------------------
# Kernel 2: fused VarUnit_s + RecUnit_s
#   [mean | pre] = x @ [W_loc | W_var] + [b_loc | b_var]   (single fused matmul)
#   var  = softplus(pre)                                    (Normal scale)
#   qz   = mean + var * eps                                 (rsample)
#   rec  = qz @ W_rec + b_rec                               (RecUnit_s)
#   output = [mean | var | qz | rec]  as one lane-dense slab
# ----------------------------------------------------------------------------
def _vae_kernel(dz, x_ref, eps_ref, wlv_ref, blv_ref, wr_ref, br_ref, o_ref):
    x = x_ref[...]                                                  # bf16
    lv = (jnp.dot(x, wlv_ref[...], preferred_element_type=jnp.float32)
          + blv_ref[...])                                           # (tm, 2*Dz) f32
    mean = lv[:, :dz]
    var = _softplus(lv[:, dz:])
    qz = mean + var * eps_ref[...]
    rec = (jnp.dot(qz.astype(jnp.bfloat16), wr_ref[...],
                   preferred_element_type=jnp.float32) + br_ref[...])
    o_ref[...] = jnp.concatenate([mean, var, qz, rec], axis=-1)


def vae_pallas(x2d, eps2d, p):
    m, din = x2d.shape
    dz = p["w_loc"].shape[1]
    tm, m_pad, nb = _row_tiles(m)
    x_p = _pad_rows(x2d.astype(jnp.bfloat16), m_pad)
    e_p = _pad_rows(eps2d.astype(jnp.float32), m_pad)

    w_lv = jnp.concatenate([p["w_loc"], p["w_var"]], axis=1).astype(jnp.bfloat16)
    b_lv = jnp.concatenate([p["b_loc"], p["b_var"]]).reshape(1, 2 * dz)
    n_out = 3 * dz + din

    out = pl.pallas_call(
        functools.partial(_vae_kernel, dz),
        out_shape=jax.ShapeDtypeStruct((m_pad, n_out), jnp.float32),
        grid=(nb,),
        in_specs=[
            pl.BlockSpec((tm, din), lambda i: (i, 0)),
            pl.BlockSpec((tm, dz), lambda i: (i, 0)),
            pl.BlockSpec((din, 2 * dz), lambda i: (0, 0)),
            pl.BlockSpec((1, 2 * dz), lambda i: (0, 0)),
            pl.BlockSpec((dz, din), lambda i: (0, 0)),
            pl.BlockSpec((1, din), lambda i: (0, 0)),
        ],
        out_specs=pl.BlockSpec((tm, n_out), lambda i: (i, 0)),
        compiler_params=pltpu.CompilerParams(dimension_semantics=("parallel",)),
    )(
        x_p, e_p,
        w_lv, b_lv.astype(jnp.float32),
        p["w_rec"].astype(jnp.bfloat16),
        p["b_rec"].reshape(1, din).astype(jnp.float32),
    )
    mean = out[:m, :dz]
    var = out[:m, dz:2 * dz]
    qz = out[:m, 2 * dz:3 * dz]
    rec = out[:m, 3 * dz:]
    return mean, var, qz, rec


# ----------------------------------------------------------------------------
# Kernel 3: fused CriticFunc MLP, evaluated on (x, z) and (x, z_shuffle)
#           in ONE pallas_call over 2*B*T rows.
# TODO(synk): CriticFunc source not in prompt; assumed LaST 3-layer MLP
#             (cat -> cat//4 -> cat//8 -> 1) with ReLU between layers
#             (dropout = identity / eval).
# ----------------------------------------------------------------------------
def _critic_kernel(x_ref, z_ref, w1x_ref, w1z_ref, b1_ref, w2_ref, b2_ref,
                   w3_ref, b3_ref, o_ref):
    # split-W1 form of Linear(concat([x, z])) -- no HBM concat needed.
    h = (jnp.dot(x_ref[...], w1x_ref[...], preferred_element_type=jnp.float32)
         + jnp.dot(z_ref[...], w1z_ref[...], preferred_element_type=jnp.float32)
         + b1_ref[...])
    h = jnp.maximum(h, 0.0)
    h = (jnp.dot(h.astype(jnp.bfloat16), w2_ref[...],
                 preferred_element_type=jnp.float32) + b2_ref[...])
    h = jnp.maximum(h, 0.0)
    # final (H2 -> 1) projection on the VPU (row reduce), not an N=1 MXU matmul.
    o_ref[...] = jnp.sum(h * w3_ref[...], axis=-1, keepdims=True) + b3_ref[0, 0]


def critic_pallas_pair(x_his, z, z_shuffle, p):
    B, T, din = x_his.shape
    dz = z.shape[-1]
    m = B * T
    tm, m_pad, nb = _row_tiles(m)

    x_p = _pad_rows(x_his.reshape(m, din).astype(jnp.bfloat16), m_pad)
    z_p = _pad_rows(z.reshape(m, dz).astype(jnp.bfloat16), m_pad)
    zs_p = _pad_rows(z_shuffle.reshape(m, dz).astype(jnp.bfloat16), m_pad)
    z_stack = jnp.concatenate([z_p, zs_p], axis=0)            # (2*m_pad, Dz)

    w1 = p["c_w1"]
    h1 = w1.shape[1]
    h2 = p["c_w2"].shape[1]
    w1x = w1[:din].astype(jnp.bfloat16)                       # (Din, H1)
    w1z = w1[din:].astype(jnp.bfloat16)                       # (Dz,  H1)

    out = pl.pallas_call(
        _critic_kernel,
        out_shape=jax.ShapeDtypeStruct((2 * m_pad, 1), jnp.float32),
        grid=(2 * nb,),
        in_specs=[
            pl.BlockSpec((tm, din), lambda j: (j % nb, 0)),   # x reused by both halves
            pl.BlockSpec((tm, dz), lambda j: (j, 0)),
            pl.BlockSpec((din, h1), lambda j: (0, 0)),
            pl.BlockSpec((dz, h1), lambda j: (0, 0)),
            pl.BlockSpec((1, h1), lambda j: (0, 0)),
            pl.BlockSpec((h1, h2), lambda j: (0, 0)),
            pl.BlockSpec((1, h2), lambda j: (0, 0)),
            pl.BlockSpec((1, h2), lambda j: (0, 0)),          # w3 as a row (f32, VPU)
            pl.BlockSpec(memory_space=pltpu.MemorySpace.SMEM),  # b3 scalar
        ],
        out_specs=pl.BlockSpec((tm, 1), lambda j: (j, 0)),
        compiler_params=pltpu.CompilerParams(dimension_semantics=("parallel",)),
    )(
        x_p, z_stack,
        w1x, w1z, p["c_b1"].reshape(1, h1).astype(jnp.float32),
        p["c_w2"].astype(jnp.bfloat16),
        p["c_b2"].reshape(1, h2).astype(jnp.float32),
        p["c_w3"].reshape(1, h2).astype(jnp.float32),
        p["c_b3"].reshape(1, 1).astype(jnp.float32),
    )
    c_pair = out[:m].reshape(B, T, 1)
    c_shuf = out[m_pad:m_pad + m].reshape(B, T, 1)
    return c_pair, c_shuf


# ----------------------------------------------------------------------------
# Kernel 4: NeuralFourierLayer per-frequency complex matmul
#   out[b,f,:] = x_fft[b,f,:] @ W[f] + bias[f]   (complex)
# rfft / irfft stay in JAX (no Pallas FFT primitive).  A block of Fb frequency
# bins is processed per grid step with a batched einsum and the 3-multiply
# (Karatsuba) complex-matmul form.
# TODO(synk): NeuralFourierLayer source not in prompt; assumed LaST layer with
#             complex weight (freq_num, in_dim, in_dim) and irfft to seq+pred.
# ----------------------------------------------------------------------------
def _fourier_kernel(xr_ref, xi_ref, wr_ref, wi_ref, br_ref, bi_ref, or_ref, oi_ref):
    xr = xr_ref[...]
    xi = xi_ref[...]
    wr = wr_ref[...]
    wi = wi_ref[...]
    t1 = jnp.einsum('fbd,fde->fbe', xr, wr, preferred_element_type=jnp.float32)
    t2 = jnp.einsum('fbd,fde->fbe', xi, wi, preferred_element_type=jnp.float32)
    t3 = jnp.einsum('fbd,fde->fbe', xr + xi, wr + wi,
                    preferred_element_type=jnp.float32)
    or_ref[...] = t1 - t2 + br_ref[...]
    oi_ref[...] = t3 - t1 - t2 + bi_ref[...]


def fourier_mix_pallas(x_fft, wr, wi, br, bi, fb_max=_FB_MAX):
    B, F, D = x_fft.shape
    xr = jnp.real(x_fft).transpose(1, 0, 2).astype(jnp.bfloat16)   # (F, B, D)
    xi = jnp.imag(x_fft).transpose(1, 0, 2).astype(jnp.bfloat16)
    wr_b = wr.astype(jnp.bfloat16)
    wi_b = wi.astype(jnp.bfloat16)
    br3 = br.reshape(F, 1, D).astype(jnp.float32)
    bi3 = bi.reshape(F, 1, D).astype(jnp.float32)

    if F <= fb_max:
        fb, f_pad = F, F
    else:
        fb = fb_max
        f_pad = ((F + fb - 1) // fb) * fb
    if f_pad != F:
        fp = (0, f_pad - F)
        xr = jnp.pad(xr, (fp, (0, 0), (0, 0)))
        xi = jnp.pad(xi, (fp, (0, 0), (0, 0)))
        wr_b = jnp.pad(wr_b, (fp, (0, 0), (0, 0)))
        wi_b = jnp.pad(wi_b, (fp, (0, 0), (0, 0)))
        br3 = jnp.pad(br3, (fp, (0, 0), (0, 0)))
        bi3 = jnp.pad(bi3, (fp, (0, 0), (0, 0)))

    o_r, o_i = pl.pallas_call(
        _fourier_kernel,
        out_shape=(jax.ShapeDtypeStruct((f_pad, B, D), jnp.float32),
                   jax.ShapeDtypeStruct((f_pad, B, D), jnp.float32)),
        grid=(f_pad // fb,),
        in_specs=[
            pl.BlockSpec((fb, B, D), lambda f: (f, 0, 0)),
            pl.BlockSpec((fb, B, D), lambda f: (f, 0, 0)),
            pl.BlockSpec((fb, D, D), lambda f: (f, 0, 0)),
            pl.BlockSpec((fb, D, D), lambda f: (f, 0, 0)),
            pl.BlockSpec((fb, 1, D), lambda f: (f, 0, 0)),
            pl.BlockSpec((fb, 1, D), lambda f: (f, 0, 0)),
        ],
        out_specs=(pl.BlockSpec((fb, B, D), lambda f: (f, 0, 0)),
                   pl.BlockSpec((fb, B, D), lambda f: (f, 0, 0))),
        compiler_params=pltpu.CompilerParams(dimension_semantics=("parallel",)),
    )(xr, xi, wr_b, wi_b, br3, bi3)
    o_r = o_r[:F].transpose(1, 0, 2)
    o_i = o_i[:F].transpose(1, 0, 2)
    return o_r + 1j * o_i                                      # (B, F, D) complex


# ----------------------------------------------------------------------------
# non-kernel glue: period_sim, parameter init, full SNet forward
# ----------------------------------------------------------------------------
def period_sim(x, y):
    # TODO(synk): period_sim source not in prompt; implemented as the mean
    # cosine similarity of non-DC rFFT amplitude spectra along the time axis.
    xa = jnp.abs(jnp.fft.rfft(x, axis=1))[:, 1:]
    ya = jnp.abs(jnp.fft.rfft(y, axis=1))[:, 1:]
    num = jnp.sum(xa * ya, axis=1)
    den = (jnp.sqrt(jnp.sum(xa * xa, axis=1)) *
           jnp.sqrt(jnp.sum(ya * ya, axis=1)) + 1e-8)
    return jnp.mean(num / den)


def init_snet_params(key, in_dim, out_dim, seq_len, pred_len, inner_s):
    ks = list(jax.random.split(key, 20))

    def lin(k, i, o):
        kw, kb = jax.random.split(k)
        s = 1.0 / jnp.sqrt(jnp.float32(i))
        w = jax.random.uniform(kw, (i, o), jnp.float32, -s, s)
        b = jax.random.uniform(kb, (o,), jnp.float32, -s, s)
        return w, b

    p = {}
    p["w_loc"], p["b_loc"] = lin(ks[0], in_dim, inner_s)     # VarUnit_s.loc_net
    p["w_var"], p["b_var"] = lin(ks[1], in_dim, inner_s)     # VarUnit_s.var_net
    p["w_rec"], p["b_rec"] = lin(ks[2], inner_s, in_dim)     # RecUnit_s
    p["w_pred"], p["b_pred"] = lin(ks[3], inner_s, out_dim)  # self.pred

    cat_dim = inner_s + in_dim                                # CriticFunc(z_dim, in_dim)
    h1, h2 = max(cat_dim // 4, 1), max(cat_dim // 8, 1)
    p["c_w1"], p["c_b1"] = lin(ks[4], cat_dim, h1)
    p["c_w2"], p["c_b2"] = lin(ks[5], h1, h2)
    p["c_w3"], p["c_b3"] = lin(ks[6], h2, 1)

    freq_num = seq_len // 2 + 1
    scale = 1.0 / inner_s
    p["f_wr"] = scale * jax.random.normal(ks[7], (freq_num, inner_s, inner_s), jnp.float32)
    p["f_wi"] = scale * jax.random.normal(ks[8], (freq_num, inner_s, inner_s), jnp.float32)
    p["f_br"] = scale * jax.random.normal(ks[9], (freq_num, inner_s), jnp.float32)
    p["f_bi"] = scale * jax.random.normal(ks[10], (freq_num, inner_s), jnp.float32)
    return p


def snet_forward(params, x_his, key, seq_len, pred_len):
    B, T, Din = x_his.shape
    Dz = params["w_loc"].shape[1]
    k_eps, k_perm = jax.random.split(key)

    # --- VarUnit_s (encode + rsample) and RecUnit_s reconstruction (fused kernel)
    eps = jax.random.normal(k_eps, (B, T, Dz), dtype=jnp.float32)
    mean2d, var2d, qz2d, rec2d = vae_pallas(
        x_his.reshape(B * T, Din), eps.reshape(B * T, Dz), params)
    mean = mean2d.reshape(B, T, Dz)
    var = var2d.reshape(B, T, Dz)
    qz = qz2d.reshape(B, T, Dz)
    xs_rec = rec2d.reshape(B, T, Din)

    # --- compute_KL (VampPrior=False): sums over time axis (dim=1)
    log_p_z = jnp.sum(-0.5 * qz * qz, axis=1)
    # TODO(synk): log_Normal_diag source not in prompt; vampprior form assumed
    #             (third argument treated as log-variance, as the LaST call does;
    #             both log-prob terms drop the 0.5*log(2*pi) constant, which
    #             cancels in the KL).
    log_q_z = jnp.sum(-0.5 * (var + (qz - mean) ** 2 / jnp.exp(var)), axis=1)
    kl = jnp.mean(-(log_p_z - log_q_z))
    elbo_s = period_sim(xs_rec, x_his) - kl

    # --- compute_MLBO (method='our'); both critic evaluations fused in one kernel
    idx = jax.random.permutation(k_perm, B)
    qz_shuffle = qz[idx]
    c_pair, c_shuf = critic_pallas_pair(x_his, qz, qz_shuffle, params)
    point = jax.lax.stop_gradient(1.0 / jnp.mean(jnp.exp(c_shuf)[..., 0]))
    mlbo_s = jnp.mean(c_pair - point * jnp.exp(c_shuf))

    # --- NeuralFourierLayer: rfft (JAX) -> blocked per-frequency complex matmul
    #     (Pallas) -> irfft (JAX) -> take last pred_len steps -> pred linear (Pallas)
    x_fft = jnp.fft.rfft(qz, axis=1)                   # (B, T//2+1, Dz)
    out_fft = fourier_mix_pallas(x_fft, params["f_wr"], params["f_wi"],
                                 params["f_br"], params["f_bi"])
    fout = jnp.fft.irfft(out_fft, n=seq_len + pred_len, axis=1)   # (B, seq+pred, Dz)
    f_tail = fout[:, -pred_len:]                                  # (B, pred_len, Dz)
    xs_pred = linear_pallas(f_tail.reshape(B * pred_len, Dz),
                            params["w_pred"], params["b_pred"]
                            ).reshape(B, pred_len, -1)

    return xs_pred, xs_rec, elbo_s, mlbo_s


if __name__ == "__main__":
    B, in_dim, out_dim, seq_len, pred_len, inner_s = 2, 8, 8, 16, 8, 16

    key = jax.random.PRNGKey(0)
    k_param, k_x, k_fwd = jax.random.split(key, 3)
    params = init_snet_params(k_param, in_dim, out_dim, seq_len, pred_len, inner_s)
    x_his = jax.random.normal(k_x, (B, seq_len, in_dim), dtype=jnp.float32)

    outs = snet_forward(params, x_his, k_fwd, seq_len=seq_len, pred_len=pred_len)
    outs = jax.block_until_ready(outs)
    xs_pred, xs_rec, elbo_s, mlbo_s = outs

    assert xs_pred.shape == (B, pred_len, out_dim)
    assert xs_rec.shape == (B, seq_len, in_dim)
    assert elbo_s.shape == () and mlbo_s.shape == ()
    assert all(bool(jnp.all(jnp.isfinite(o))) for o in (xs_pred, xs_rec, elbo_s, mlbo_s))
    print("KERNEL_OK")
</pallas_src>

<mosaic_0001>
module attributes {stable_mosaic.version = 11 : i64} {
  func.func @_vae_kernel(%arg0: i32, %arg1: memref<32x8xbf16, #tpu.memory_space<vmem>>, %arg2: memref<32x16xf32, #tpu.memory_space<vmem>>, %arg3: memref<8x32xbf16, #tpu.memory_space<vmem>>, %arg4: memref<1x32xf32, #tpu.memory_space<vmem>>, %arg5: memref<16x8xbf16, #tpu.memory_space<vmem>>, %arg6: memref<1x8xf32, #tpu.memory_space<vmem>>, %arg7: memref<32x56xf32, #tpu.memory_space<vmem>>) attributes {dimension_semantics = [#tpu.dimension_semantics<parallel>], iteration_bounds = array<i64: 1>, scalar_prefetch = 0 : i64, scratch_operands = 0 : i64, tpu.core_type = #tpu.core_type<tc>, window_params = [{transform_indices = @transform_0, window_bounds = array<i64: 32, 8>}, {transform_indices = @transform_1, window_bounds = array<i64: 32, 16>}, {pipeline_mode = #tpu.pipeline_mode<synchronous>, transform_indices = @transform_2, window_bounds = array<i64: 8, 32>}, {pipeline_mode = #tpu.pipeline_mode<synchronous>, transform_indices = @transform_3, window_bounds = array<i64: 1, 32>}, {pipeline_mode = #tpu.pipeline_mode<synchronous>, transform_indices = @transform_4, window_bounds = array<i64: 16, 8>}, {pipeline_mode = #tpu.pipeline_mode<synchronous>, transform_indices = @transform_5, window_bounds = array<i64: 1, 8>}, {transform_indices = @transform_6, window_bounds = array<i64: 32, 56>}]} {
    %c0 = arith.constant 0 : index
    %c0_0 = arith.constant 0 : index
    %0 = vector.load %arg1[%c0, %c0_0] : memref<32x8xbf16, #tpu.memory_space<vmem>>, vector<32x8xbf16>
    %c0_1 = arith.constant 0 : index
    %c0_2 = arith.constant 0 : index
    %1 = vector.load %arg3[%c0_1, %c0_2] : memref<8x32xbf16, #tpu.memory_space<vmem>>, vector<8x32xbf16>
    %cst = arith.constant dense<0.000000e+00> : vector<32x32xf32>
    %2 = tpu.matmul %0, %1, %cst {dimension_numbers = #tpu.dot_dimension_numbers<[1], [0], [0], [1], [0, 0, 1, 1], [], []>} : vector<32x8xbf16>, vector<8x32xbf16>, vector<32x32xf32> -> vector<32x32xf32>
    %c0_3 = arith.constant 0 : index
    %c0_4 = arith.constant 0 : index
    %3 = vector.load %arg4[%c0_3, %c0_4] : memref<1x32xf32, #tpu.memory_space<vmem>>, vector<1x32xf32>
    %4 = vector.broadcast %3 : vector<1x32xf32> to vector<32x32xf32>
    %5 = arith.addf %2, %4 : vector<32x32xf32>
    %6 = vector.extract_strided_slice %5 {offsets = [0, 0], sizes = [32, 16], strides = [1, 1]} : vector<32x32xf32> to vector<32x16xf32>
    %7 = vector.extract_strided_slice %5 {offsets = [0, 16], sizes = [32, 16], strides = [1, 1]} : vector<32x32xf32> to vector<32x16xf32>
    %cst_5 = arith.constant 2.000000e+01 : f32
    %8 = vector.broadcast %cst_5 : f32 to vector<32x16xf32>
    %9 = arith.cmpf ogt, %7, %8 : vector<32x16xf32>
    %cst_6 = arith.constant 2.000000e+01 : f32
    %10 = vector.broadcast %cst_6 : f32 to vector<32x16xf32>
    %11 = arith.minimumf %7, %10 : vector<32x16xf32>
    %12 = math.exp %11 : vector<32x16xf32>
    %13 = math.log1p %12 : vector<32x16xf32>
    %14 = arith.select %9, %7, %13 : vector<32x16xi1>, vector<32x16xf32>
    %c0_7 = arith.constant 0 : index
    %c0_8 = arith.constant 0 : index
    %15 = vector.load %arg2[%c0_7, %c0_8] : memref<32x16xf32, #tpu.memory_space<vmem>>, vector<32x16xf32>
    %16 = arith.mulf %14, %15 : vector<32x16xf32>
    %17 = arith.addf %6, %16 : vector<32x16xf32>
    %18 = arith.truncf %17 : vector<32x16xf32> to vector<32x16xbf16>
    %c0_9 = arith.constant 0 : index
    %c0_10 = arith.constant 0 : index
    %19 = vector.load %arg5[%c0_9, %c0_10] : memref<16x8xbf16, #tpu.memory_space<vmem>>, vector<16x8xbf16>
    %cst_11 = arith.constant dense<0.000000e+00> : vector<32x8xf32>
    %20 = tpu.matmul %18, %19, %cst_11 {dimension_numbers = #tpu.dot_dimension_numbers<[1], [0], [0], [1], [0, 0, 1, 1], [], []>} : vector<32x16xbf16>, vector<16x8xbf16>, vector<32x8xf32> -> vector<32x8xf32>
    %c0_12 = arith.constant 0 : index
    %c0_13 = arith.constant 0 : index
    %21 = vector.load %arg6[%c0_12, %c0_13] : memref<1x8xf32, #tpu.memory_space<vmem>>, vector<1x8xf32>
    %22 = vector.broadcast %21 : vector<1x8xf32> to vector<32x8xf32>
    %23 = arith.addf %20, %22 : vector<32x8xf32>
    %24 = tpu.concatenate %6, %14, %17, %23 in 1 : vector<32x16xf32>, vector<32x16xf32>, vector<32x16xf32>, vector<32x8xf32> -> vector<32x56xf32>
    %c0_14 = arith.constant 0 : index
    %c0_15 = arith.constant 0 : index
    %25 = vector.load %arg7[%c0_14, %c0_15] : memref<32x56xf32, #tpu.memory_space<vmem>>, vector<32x56xf32>
    tpu.vector_store %arg7[%c0_14, %c0_15], %24 {strides = array<i32>} : memref<32x56xf32, #tpu.memory_space<vmem>>, vector<32x56xf32>,
    return
  }
  func.func @transform_0(%arg0: i32) -> (i32, i32) {
    %c0_i32 = arith.constant 0 : i32
    %c0_i32_0 = arith.constant 0 : i32
    return %arg0, %c0_i32 : i32, i32
  }
  func.func @transform_1(%arg0: i32) -> (i32, i32) {
    %c0_i32 = arith.constant 0 : i32
    %c0_i32_0 = arith.constant 0 : i32
    return %arg0, %c0_i32 : i32, i32
  }
  func.func @transform_2(%arg0: i32) -> (i32, i32) {
    %c0_i32 = arith.constant 0 : i32
    %c0_i32_0 = arith.constant 0 : i32
    %c0_i32_1 = arith.constant 0 : i32
    return %c0_i32, %c0_i32_0 : i32, i32
  }
  func.func @transform_3(%arg0: i32) -> (i32, i32) {
    %c0_i32 = arith.constant 0 : i32
    %c0_i32_0 = arith.constant 0 : i32
    %c0_i32_1 = arith.constant 0 : i32
    return %c0_i32, %c0_i32_0 : i32, i32
  }
  func.func @transform_4(%arg0: i32) -> (i32, i32) {
    %c0_i32 = arith.constant 0 : i32
    %c0_i32_0 = arith.constant 0 : i32
    %c0_i32_1 = arith.constant 0 : i32
    return %c0_i32, %c0_i32_0 : i32, i32
  }
  func.func @transform_5(%arg0: i32) -> (i32, i32) {
    %c0_i32 = arith.constant 0 : i32
    %c0_i32_0 = arith.constant 0 : i32
    %c0_i32_1 = arith.constant 0 : i32
    return %c0_i32, %c0_i32_0 : i32, i32
  }
  func.func @transform_6(%arg0: i32) -> (i32, i32) {
    %c0_i32 = arith.constant 0 : i32
    %c0_i32_0 = arith.constant 0 : i32
    return %arg0, %c0_i32 : i32, i32
  }
}

</mosaic_0001>

<llo_original>
// kernel: tpu_custom_call.1
$region0: #{tpu_custom_call.1}
  #allocation0 [shape = 'u32[]', space=smem, size = 0x4, offset = 0x4, fixed_abs, tag = 'smem constant byte address 0x4 - core index']
  #allocation1 [shape = 'u32[72,128]{1,0:T(1,128)}', space=vmem, size = 0x9000, scoped, tag = 'internal scratch']
  %s0 = inlined_call_operand.vmem [shape: bf16[32,8], index: 0, kind: input, shape index: {}]
  %s1 = inlined_call_operand.vmem [shape: f32[32,16], index: 1, kind: input, shape index: {}]
  %s2 = inlined_call_operand.vmem [shape: bf16[8,32], index: 2, kind: input, shape index: {}]
  %s3 = inlined_call_operand.vmem [shape: f32[1,32], index: 3, kind: input, shape index: {}]
  %s4 = inlined_call_operand.vmem [shape: bf16[16,8], index: 4, kind: input, shape index: {}]
  %s5 = inlined_call_operand.vmem [shape: f32[1,8], index: 5, kind: input, shape index: {}]
  %s6 = inlined_call_operand.hbm [shape: f32[32,56], index: 6, kind: output, shape index: {}]
  %s7 = sld [smem:[#allocation0]]
  $region34: #{tpu_custom_call.1} parent=0
    _
  %s9 = ssub.s32 1, %s7
  %s10 = scalar_select 0, %s9, %s7
  $region1: #{tpu_custom_call.1} parent=0
    #allocation2 [shape = 'u8[16384]{0}', space=vmem, size = 0x4000, scoped, tag = 'output window, operand 0, single buffered']
    #allocation3 [shape = 's32[1]{0}', space=sflag, size = 0x4, scoped, tag = 'scoped memory for tpu_custom_call.1']
    %11 = vsyncpa [#allocation3], 0
    // Predicated region
    $region2: #{tpu_custom_call.1} parent=1 // pred_check
      _
    $region3: #{tpu_custom_call.1} parent=1 // pred_check_branch
      %13 = sbr.rel (0) target = $region5
    $region4: #{tpu_custom_call.1} parent=1 // pred_region
      _
    $region5: #{tpu_custom_call.1} parent=1 // pred_fallthru
      _
    // Predicated region
    $region6: #{tpu_custom_call.1} parent=1 // pred_check
      _
    $region7: #{tpu_custom_call.1} parent=1 // pred_check_branch
      %15 = sbr.rel (0) target = $region9
    $region8: #{tpu_custom_call.1} parent=1 // pred_region
      _
    $region9: #{tpu_custom_call.1} parent=1 // pred_fallthru
      _
    // Predicated region
    $region10: #{tpu_custom_call.1} parent=1 // pred_check
      _
    $region11: #{tpu_custom_call.1} parent=1 // pred_check_branch
      %17 = sbr.rel (0) target = $region13
    $region12: #{tpu_custom_call.1} parent=1 // pred_region
      _
    $region13: #{tpu_custom_call.1} parent=1 // pred_fallthru
      _
    // Predicated region
    $region14: #{tpu_custom_call.1} parent=1 // pred_check
      _
    $region15: #{tpu_custom_call.1} parent=1 // pred_check_branch
      %19 = sbr.rel (0) target = $region17
    $region16: #{tpu_custom_call.1} parent=1 // pred_region
      _
    $region17: #{tpu_custom_call.1} parent=1 // pred_fallthru
      _
    // Predicated region
    $region18: #{tpu_custom_call.1} parent=1 // pred_check
      _
    $region19: #{tpu_custom_call.1} parent=1 // pred_check_branch
      %21 = sbr.rel (0) target = $region21
    $region20: #{tpu_custom_call.1} parent=1 // pred_region
      _
    $region21: #{tpu_custom_call.1} parent=1 // pred_fallthru
      _
    // Predicated region
    $region22: #{tpu_custom_call.1} parent=1 // pred_check
      _
    $region23: #{tpu_custom_call.1} parent=1 // pred_check_branch
      %23 = sbr.rel (0) target = $region25
    $region24: #{tpu_custom_call.1} parent=1 // pred_region
      _
    $region25: #{tpu_custom_call.1} parent=1 // pred_fallthru
      _
    %v25 = vld [vmem:[%s0] sm:$0xf]
    %v26 = vld [vmem:[%s0 + $0x4] sm:$0xf]
    %v27 = vld [vmem:[%s0 + $0x8] sm:$0xf]
    %v28 = vld [vmem:[%s0 + $0xc] sm:$0xf]
    %v29 = vld [vmem:[%s2] sm:$0xf]
    %v30 = vld [vmem:[%s3] sm:$0x1]
    %v32 = vperm.slane %v30, 0
    %v38 = vunpack.c.l.b16 %v25
    %v39 = vunpack.c.l.b16 %v26
    %v40 = vunpack.c.l.b16 %v27
    %v41 = vunpack.c.l.b16 %v28
    %v42 = vpack.c.b16 %v39, %v38
    %v43 = vpack.c.b16 %v41, %v40
    %vm44 = vcmask 64512
    %v46 = vsel %vm44, %v42, 0
    %v49 = vsel %vm44, %v43, 0
    %vm51 = vcmask 1043456
    %v53 = vsel %vm51, %v29, 0
    %55 = vmatpush.bf16.msra.mxu0 0
    %56 = vmatpush.bf16.msra.mxu0 0
    %57 = vmatpush.bf16.msra.mxu0 0
    %58 = vmatpush.bf16.msra.mxu0 0
    %59 = vmatpush.bf16.msra.mxu0 0
    %60 = vmatpush.bf16.msra.mxu0 0
    %61 = vmatpush.bf16.msra.mxu0 0
    %62 = vmatpush.bf16.msra.mxu0 %v53
    %63 = vmatmul.bf16.gmra.mxu0 %v46
    %v64 = vpop.f32.mrf.mxu0
    %v65 = vadd.f32 %v32, %v64
    %v66 = vpop.f32.mrf.mxu0
    %v67 = vadd.f32 %v32, %v66
    %68 = vmatmul.bf16.gmra.mxu0 %v49
    %v69 = vpop.f32.mrf.mxu0
    %v70 = vadd.f32 %v32, %v69
    %v71 = vpop.f32.mrf.mxu0
    %v72 = vadd.f32 %v32, %v71
    %73 = vdwg.mxu0
    %vm74 = vcmp.gt.f32.partialorder %v65, 20.0
    %vm75 = vcmp.gt.f32.partialorder %v67, 20.0
    %vm76 = vcmp.gt.f32.partialorder %v70, 20.0
    %vm77 = vcmp.gt.f32.partialorder %v72, 20.0
    %v78 = vmin.f32 %v65, 20.0
    %v79 = vmin.f32 %v67, 20.0
    %v80 = vmin.f32 %v70, 20.0
    %v81 = vmin.f32 %v72, 20.0
    %v82 = vmul.f32 %v78, 1.442695
    %v83 = vpow.pop %v82
    %v84 = vmul.f32 %v79, 1.442695
    %v85 = vpow.pop %v84
    %v86 = vmul.f32 %v80, 1.442695
    %v87 = vpow.pop %v86
    %v88 = vmul.f32 %v81, 1.442695
    %v89 = vpow.pop %v88
    %v90 = vadd.f32 %v83, 1.0
    %v91 = vlog2.pop %v90
    %v92 = vmul.f32 %v91, 0.6931472
    %v93 = vmul.f32 -0.5, %v83
    %v94 = vadd.f32 %v93, 1.0
    %v95 = vmul.f32 %v94, %v83
    %v96 = vand.u32 2147483647, %v83
    %vm97 = vcmp.lt.f32.partialorder %v96, 0.0004427343
    %v98 = vsel %vm97, %v95, %v92
    %v99 = vadd.f32 %v85, 1.0
    %v100 = vlog2.pop %v99
    %v101 = vmul.f32 %v100, 0.6931472
    %v102 = vmul.f32 -0.5, %v85
    %v103 = vadd.f32 %v102, 1.0
    %v104 = vmul.f32 %v103, %v85
    %v105 = vand.u32 2147483647, %v85
    %vm106 = vcmp.lt.f32.partialorder %v105, 0.0004427343
    %v107 = vsel %vm106, %v104, %v101
    %v108 = vadd.f32 %v87, 1.0
    %v109 = vlog2.pop %v108
    %v110 = vmul.f32 %v109, 0.6931472
    %v111 = vmul.f32 -0.5, %v87
    %v112 = vadd.f32 %v111, 1.0
    %v113 = vmul.f32 %v112, %v87
    %v114 = vand.u32 2147483647, %v87
    %vm115 = vcmp.lt.f32.partialorder %v114, 0.0004427343
    %v116 = vsel %vm115, %v113, %v110
    %v117 = vadd.f32 %v89, 1.0
    %v118 = vlog2.pop %v117
    %v119 = vmul.f32 %v118, 0.6931472
    %v120 = vmul.f32 -0.5, %v89
    %v121 = vadd.f32 %v120, 1.0
    %v122 = vmul.f32 %v121, %v89
    %v123 = vand.u32 2147483647, %v89
    %vm124 = vcmp.lt.f32.partialorder %v123, 0.0004427343
    %v125 = vsel %vm124, %v122, %v119
    %v126 = vsel %vm74, %v65, %v98
    %v127 = vsel %vm75, %v67, %v107
    %v128 = vsel %vm76, %v70, %v116
    %v129 = vsel %vm77, %v72, %v125
    %v130 = vld [vmem:[%s1] sm:$0xff]
    %v131 = vld [vmem:[%s1 + $0x8] sm:$0xff]
    %v132 = vld [vmem:[%s1 + $0x10] sm:$0xff]
    %v133 = vld [vmem:[%s1 + $0x18] sm:$0xff]
    %138 = vrot.lane.b32.xlu0 %v130, 16
    %v139 = vpop.permute.xlu0 %138
    %140 = vrot.lane.b32.xlu0 %v131, 16
    %v141 = vpop.permute.xlu0 %140
    %142 = vrot.lane.b32.xlu0 %v132, 16
    %v143 = vpop.permute.xlu0 %142
    %144 = vrot.lane.b32.xlu0 %v133, 16
    %v145 = vpop.permute.xlu0 %144
    %v150 = vmul.f32 %v126, %v139
    %v151 = vmul.f32 %v127, %v141
    %v152 = vmul.f32 %v128, %v143
    %v153 = vmul.f32 %v129, %v145
    %158 = vrot.lane.b32.xlu0 %v150, 112
    %v159 = vpop.permute.xlu0 %158
    %160 = vrot.lane.b32.xlu0 %v151, 112
    %v161 = vpop.permute.xlu0 %160
    %162 = vrot.lane.b32.xlu0 %v152, 112
    %v163 = vpop.permute.xlu0 %162
    %164 = vrot.lane.b32.xlu0 %v153, 112
    %v165 = vpop.permute.xlu0 %164
    %v170 = vadd.f32 %v65, %v159
    %v171 = vadd.f32 %v67, %v161
    %v172 = vadd.f32 %v70, %v163
    %v173 = vadd.f32 %v72, %v165
    %v174 = vpack.c.bf16 %v171, %v170
    %v175 = vpack.c.bf16 %v173, %v172
    %v176 = vld [vmem:[%s4] sm:$0xf]
    %v177 = vld [vmem:[%s4 + $0x4] sm:$0xf]
    %v178 = vld [vmem:[%s5] sm:$0x1]
    %v180 = vperm.slane %v178, 0
    %v184 = vunpack.c.l.b16 %v176
    %v185 = vunpack.c.l.b16 %v177
    %v186 = vpack.c.b16 %v185, %v184
    %vm188 = vcmask 130048
    %v190 = vsel %vm188, %v174, 0
    %v193 = vsel %vm188, %v175, 0
    %195 = vmatpush.bf16.msra.mxu0 0
    %196 = vmatpush.bf16.msra.mxu0 0
    %197 = vmatpush.bf16.msra.mxu0 0
    %198 = vmatpush.bf16.msra.mxu0 0
    %199 = vmatpush.bf16.msra.mxu0 0
    %200 = vmatpush.bf16.msra.mxu0 0
    %201 = vmatpush.bf16.msra.mxu0 0
    %202 = vmatpush.bf16.msra.mxu0 %v186
    %203 = vmatmul.bf16.gmra.mxu0 %v190
    %v204 = vpop.f32.mrf.mxu0
    %v205 = vadd.f32 %v180, %v204
    %v206 = vpop.f32.mrf.mxu0
    %v207 = vadd.f32 %v180, %v206
    %208 = vmatmul.bf16.gmra.mxu0 %v193
    %v209 = vpop.f32.mrf.mxu0
    %v210 = vadd.f32 %v180, %v209
    %v211 = vpop.f32.mrf.mxu0
    %v212 = vadd.f32 %v180, %v211
    %213 = vdwg.mxu0
    %218 = vrot.lane.b32.xlu0 %v170, 32
    %v219 = vpop.permute.xlu0 %218
    %220 = vrot.lane.b32.xlu0 %v171, 32
    %v221 = vpop.permute.xlu0 %220
    %222 = vrot.lane.b32.xlu0 %v172, 32
    %v223 = vpop.permute.xlu0 %222
    %224 = vrot.lane.b32.xlu0 %v173, 32
    %v225 = vpop.permute.xlu0 %224
    %234 = vrot.lane.b32.xlu0 %v205, 48
    %v235 = vpop.permute.xlu0 %234
    %236 = vrot.lane.b32.xlu0 %v207, 48
    %v237 = vpop.permute.xlu0 %236
    %238 = vrot.lane.b32.xlu0 %v210, 48
    %v239 = vpop.permute.xlu0 %238
    %240 = vrot.lane.b32.xlu0 %v212, 48
    %v241 = vpop.permute.xlu0 %240
    %v246 = vsel %vm188, %v65, %v126
    %v247 = vsel %vm188, %v67, %v127
    %v248 = vsel %vm188, %v70, %v128
    %v249 = vsel %vm188, %v72, %v129
    %vm250 = vcmask 261120
    %v251 = vsel %vm250, %v246, %v219
    %v252 = vsel %vm250, %v247, %v221
    %v253 = vsel %vm250, %v248, %v223
    %v254 = vsel %vm250, %v249, %v225
    %vm255 = vcmask 392192
    %v256 = vsel %vm255, %v251, %v235
    %v257 = vsel %vm255, %v252, %v237
    %v258 = vsel %vm255, %v253, %v239
    %v259 = vsel %vm255, %v254, %v241
    %vm260 = vcmask 457728
    %261 = vst.msk [vmem:[#allocation2] sm:$0xff] %vm260, %v256
    %262 = vst.msk [vmem:[#allocation2 + $0x8] sm:$0xff] %vm260, %v257
    %263 = vst.msk [vmem:[#allocation2 + $0x10] sm:$0xff] %vm260, %v258
    %264 = vst.msk [vmem:[#allocation2 + $0x18] sm:$0xff] %vm260, %v259
    // Predicated region
    $region26: #{tpu_custom_call.1} parent=1 // pred_check
      _
    $region27: #{tpu_custom_call.1} parent=1 // pred_check_branch
      %266 = sbr.rel (0) target = $region29
    $region28: #{tpu_custom_call.1} parent=1 // pred_region
      %268 = vsyncadd [#allocation3], 0
      %s269 = sshll.u32 [#allocation2], 4
      %s270 = int_to_ptr.vmem [resolvable:$true] %s269
      %s271 = sshll.u32 %s6, 4
      %s272 = int_to_ptr.hbm [resolvable:$true] %s271
      %277 = dma.vmem_to_hbm [thread:$0]  %s270, 512, %s272, [#allocation3], 128, 128, 8
    $region29: #{tpu_custom_call.1} parent=1 // pred_fallthru
      _
    // Predicated region
    $region30: #{tpu_custom_call.1} parent=1 // pred_check
      _
    $region31: #{tpu_custom_call.1} parent=1 // pred_check_branch
      %279 = sbr.rel (0) target = $region33
    $region32: #{tpu_custom_call.1} parent=1 // pred_region
      %281 = dma.done [#allocation3], 512
    $region33: #{tpu_custom_call.1} parent=1 // pred_fallthru
      _
    %282 = vsyncpa [#allocation3], 1

</llo_original>
